<compile_context>
chip_gen: v7x
topology: tpu7x:2x2x1
jax: 0.10.0
libtpu: 0.0.40
codegen_flags: <defaults>
</compile_context>

<pallas_src>
import jax
import jax.numpy as jnp
from jax.experimental import pallas as pl
from jax.experimental.pallas import tpu as pltpu

HIDDEN_SIZE = 10


def rnn_linear_kernel(scalars_ref, p_ref, out_ref, hout_ref, h_all):
    """Elman RNN (tanh) over the full sequence + Linear head, single TensorCore.

    scalars_ref : SMEM (seq+1,)  x[0..seq-1] followed by b_lin at index seq
    p_ref       : VMEM (H+4, H)  rows 0..H-1 = W_hh^T, row H = W_ih^T,
                                 row H+1 = b_ih+b_hh, row H+2 = W_lin, row H+3 = h0
    out_ref     : VMEM (1, seq)  lane-dense per-step linear outputs
    hout_ref    : VMEM (1, H)    final hidden state
    h_all       : VMEM (seq, H)  scratch holding every hidden state
    """
    H = HIDDEN_SIZE
    seq_len = out_ref.shape[1]

    # Loop-invariant parameter loads (hoisted once; static slices are free views).
    w_hh = p_ref[0:H, :]              # (H, H)   W_hh^T
    w_ih = p_ref[H:H + 1, :]          # (1, H)   W_ih^T (input_size = 1)
    b = p_ref[H + 1:H + 2, :]         # (1, H)   b_ih + b_hh
    w_lin = p_ref[H + 2:H + 3, :]     # (1, H)   linear.weight
    h0 = p_ref[H + 3:H + 4, :]        # (1, H)   initial hidden state
    b_lin = scalars_ref[seq_len]      # scalar   linear.bias

    def step(t, h):
        x_t = scalars_ref[t]          # scalar sld from SMEM
        # x_t*W_ih + b is independent of h -> schedulable ahead of the matmul chain.
        pre = (x_t * w_ih + b
               + jnp.dot(h, w_hh, preferred_element_type=jnp.float32))   # (1, H)
        h_new = jnp.tanh(pre)         # EUP
        h_all[pl.ds(t, 1), :] = h_new  # off critical path
        return h_new

    # seq is static at trace time -> fully unroll short sequences so consecutive steps'
    # independent work (SMEM reads, VPU mul/add, VMEM stores) hides under the serial
    # MXU + tanh latency chain.
    if seq_len <= 128:
        h_last = h0
        for t in range(seq_len):
            h_last = step(t, h_last)
    else:
        h_last = jax.lax.fori_loop(0, seq_len, step, h0, unroll=8)

    hout_ref[...] = h_last

    # Linear head over all timesteps at once, lane-dense result:
    #   (1, H) . (seq, H)^T  ->  (1, seq)    (contraction over H, no transpose materialized)
    out_ref[...] = (jax.lax.dot_general(
        w_lin, h_all[...],
        dimension_numbers=(((1,), (1,)), ((), ())),
        preferred_element_type=jnp.float32) + b_lin)

    # TODO(synk): for very long sequences, switch to a 1-D "arbitrary" grid over seq
    # chunks (x/out chunked BlockSpecs, hidden carried in persistent VMEM scratch) so
    # DMA overlaps the recurrence and VMEM stays bounded on v7x's 64 MiB.


def net_forward(x, hidden_prev, params):
    """x: (1, seq, 1) f32, hidden_prev: (1, 1, H) f32 (PyTorch batch_first layout)."""
    seq = x.shape[1]
    H = HIDDEN_SIZE

    # SMEM scalars: inputs followed by the linear bias.
    scalars = jnp.concatenate(
        [x.reshape(seq).astype(jnp.float32),
         params["b_lin"].reshape(1).astype(jnp.float32)])            # (seq + 1,)

    # Single packed VMEM parameter block: (H+4, H)
    packed = jnp.concatenate(
        [params["w_hh"].T,                                           # (H, H)
         params["w_ih"].T,                                           # (1, H)
         (params["b_ih"] + params["b_hh"]).reshape(1, H),            # (1, H)
         params["w_lin"].reshape(1, H),                              # (1, H)
         hidden_prev.reshape(1, H)],                                 # (1, H)
        axis=0).astype(jnp.float32)

    out_row, h_last = pl.pallas_call(
        rnn_linear_kernel,
        out_shape=(jax.ShapeDtypeStruct((1, seq), jnp.float32),      # lane-dense
                   jax.ShapeDtypeStruct((1, H), jnp.float32)),
        in_specs=[pl.BlockSpec(memory_space=pltpu.MemorySpace.SMEM),
                  pl.BlockSpec(memory_space=pltpu.MemorySpace.VMEM)],
        out_specs=(pl.BlockSpec(memory_space=pltpu.MemorySpace.VMEM),
                   pl.BlockSpec(memory_space=pltpu.MemorySpace.VMEM)),
        scratch_shapes=[pltpu.VMEM((seq, H), jnp.float32)],
    )(scalars, packed)

    out = out_row.reshape(1, seq, 1)          # == linear(out.view(-1,10)).unsqueeze(0)
    hidden = h_last.reshape(1, 1, H)          # (1, 1, H)
    return out, hidden


def net_forward_ref(x, hidden_prev, params):
    """Pure-JAX reference (mirrors PyTorch nn.RNN(tanh) + nn.Linear)."""
    seq = x.shape[1]
    h = hidden_prev.reshape(1, HIDDEN_SIZE)
    hs = []
    for t in range(seq):
        x_t = x[0, t, :]                                      # (1,)
        pre = (x_t @ params["w_ih"].T + params["b_ih"]
               + h @ params["w_hh"].T + params["b_hh"])
        h = jnp.tanh(pre)
        hs.append(h)
    h_all = jnp.concatenate(hs, axis=0)                       # (seq, H)
    out = h_all @ params["w_lin"].T + params["b_lin"]         # (seq, 1)
    return out[None], h.reshape(1, 1, HIDDEN_SIZE)


def init_params(key):
    """Deterministic init matching PyTorch nn.RNN / nn.Linear shapes."""
    k = jax.random.split(key, 6)
    bound = 1.0 / jnp.sqrt(HIDDEN_SIZE)
    u = lambda kk, shape: jax.random.uniform(kk, shape, jnp.float32, -bound, bound)
    return {
        "w_ih": u(k[0], (HIDDEN_SIZE, 1)),            # rnn.weight_ih_l0
        "w_hh": u(k[1], (HIDDEN_SIZE, HIDDEN_SIZE)),  # rnn.weight_hh_l0
        "b_ih": u(k[2], (HIDDEN_SIZE,)),              # rnn.bias_ih_l0
        "b_hh": u(k[3], (HIDDEN_SIZE,)),              # rnn.bias_hh_l0
        "w_lin": u(k[4], (1, HIDDEN_SIZE)),           # linear.weight
        "b_lin": u(k[5], (1,)),                       # linear.bias
    }


if __name__ == "__main__":
    key = jax.random.PRNGKey(0)
    k_param, k_x = jax.random.split(key)

    params = init_params(k_param)

    seq_len = 8
    x = jax.random.normal(k_x, (1, seq_len, 1), jnp.float32)   # (batch=1, seq, input=1)
    hidden_prev = jnp.zeros((1, 1, HIDDEN_SIZE), jnp.float32)

    out, hidden = net_forward(x, hidden_prev, params)
    out, hidden = jax.block_until_ready(out), jax.block_until_ready(hidden)

    out_ref, hidden_ref = net_forward_ref(x, hidden_prev, params)
    assert out.shape == (1, seq_len, 1) and hidden.shape == (1, 1, HIDDEN_SIZE)
    assert jnp.allclose(out, out_ref, atol=1e-5, rtol=1e-5)
    assert jnp.allclose(hidden, hidden_ref, atol=1e-5, rtol=1e-5)

    print("KERNEL_OK")
</pallas_src>

<mosaic_0001>
module attributes {stable_mosaic.version = 11 : i64} {
  func.func @rnn_linear_kernel(%arg0: memref<9xf32, #tpu.memory_space<smem>>, %arg1: memref<14x10xf32, #tpu.memory_space<vmem>>, %arg2: memref<1x8xf32, #tpu.memory_space<vmem>>, %arg3: memref<1x10xf32, #tpu.memory_space<vmem>>, %arg4: memref<8x10xf32, #tpu.memory_space<vmem>>) attributes {dimension_semantics = [], scalar_prefetch = 0 : i64, scratch_operands = 1 : i64, tpu.core_type = #tpu.core_type<tc>} {
    %c0 = arith.constant 0 : index
    %c0_0 = arith.constant 0 : index
    %0 = vector.load %arg1[%c0, %c0_0] : memref<14x10xf32, #tpu.memory_space<vmem>>, vector<10x10xf32>
    %c10 = arith.constant 10 : index
    %c0_1 = arith.constant 0 : index
    %1 = vector.load %arg1[%c10, %c0_1] : memref<14x10xf32, #tpu.memory_space<vmem>>, vector<1x10xf32>
    %c11 = arith.constant 11 : index
    %c0_2 = arith.constant 0 : index
    %2 = vector.load %arg1[%c11, %c0_2] : memref<14x10xf32, #tpu.memory_space<vmem>>, vector<1x10xf32>
    %c12 = arith.constant 12 : index
    %c0_3 = arith.constant 0 : index
    %3 = vector.load %arg1[%c12, %c0_3] : memref<14x10xf32, #tpu.memory_space<vmem>>, vector<1x10xf32>
    %c13 = arith.constant 13 : index
    %c0_4 = arith.constant 0 : index
    %4 = vector.load %arg1[%c13, %c0_4] : memref<14x10xf32, #tpu.memory_space<vmem>>, vector<1x10xf32>
    %c8 = arith.constant 8 : index
    %5 = memref.load %arg0[%c8] : memref<9xf32, #tpu.memory_space<smem>>
    %c0_5 = arith.constant 0 : index
    %6 = memref.load %arg0[%c0_5] : memref<9xf32, #tpu.memory_space<smem>>
    %7 = vector.broadcast %6 : f32 to vector<1x10xf32>
    %8 = arith.mulf %7, %1 : vector<1x10xf32>
    %9 = arith.addf %8, %2 : vector<1x10xf32>
    %cst = arith.constant dense<0.000000e+00> : vector<1x10xf32>
    %10 = tpu.matmul %4, %0, %cst {dimension_numbers = #tpu.dot_dimension_numbers<[1], [0], [0], [1], [0, 0, 1, 1], [], []>} : vector<1x10xf32>, vector<10x10xf32>, vector<1x10xf32> -> vector<1x10xf32>
    %11 = arith.addf %9, %10 : vector<1x10xf32>
    %12 = math.tanh %11 : vector<1x10xf32>
    %c0_6 = arith.constant 0 : index
    %c0_7 = arith.constant 0 : index
    %13 = vector.load %arg4[%c0_6, %c0_7] : memref<8x10xf32, #tpu.memory_space<vmem>>, vector<1x10xf32>
    tpu.vector_store %arg4[%c0_6, %c0_7], %12 {strides = array<i32>} : memref<8x10xf32, #tpu.memory_space<vmem>>, vector<1x10xf32>,
    %c1 = arith.constant 1 : index
    %14 = memref.load %arg0[%c1] : memref<9xf32, #tpu.memory_space<smem>>
    %15 = vector.broadcast %14 : f32 to vector<1x10xf32>
    %16 = arith.mulf %15, %1 : vector<1x10xf32>
    %17 = arith.addf %16, %2 : vector<1x10xf32>
    %cst_8 = arith.constant dense<0.000000e+00> : vector<1x10xf32>
    %18 = tpu.matmul %12, %0, %cst_8 {dimension_numbers = #tpu.dot_dimension_numbers<[1], [0], [0], [1], [0, 0, 1, 1], [], []>} : vector<1x10xf32>, vector<10x10xf32>, vector<1x10xf32> -> vector<1x10xf32>
    %19 = arith.addf %17, %18 : vector<1x10xf32>
    %20 = math.tanh %19 : vector<1x10xf32>
    %c1_9 = arith.constant 1 : index
    %c0_10 = arith.constant 0 : index
    %21 = vector.load %arg4[%c1_9, %c0_10] : memref<8x10xf32, #tpu.memory_space<vmem>>, vector<1x10xf32>
    tpu.vector_store %arg4[%c1_9, %c0_10], %20 {strides = array<i32>} : memref<8x10xf32, #tpu.memory_space<vmem>>, vector<1x10xf32>,
    %c2 = arith.constant 2 : index
    %22 = memref.load %arg0[%c2] : memref<9xf32, #tpu.memory_space<smem>>
    %23 = vector.broadcast %22 : f32 to vector<1x10xf32>
    %24 = arith.mulf %23, %1 : vector<1x10xf32>
    %25 = arith.addf %24, %2 : vector<1x10xf32>
    %cst_11 = arith.constant dense<0.000000e+00> : vector<1x10xf32>
    %26 = tpu.matmul %20, %0, %cst_11 {dimension_numbers = #tpu.dot_dimension_numbers<[1], [0], [0], [1], [0, 0, 1, 1], [], []>} : vector<1x10xf32>, vector<10x10xf32>, vector<1x10xf32> -> vector<1x10xf32>
    %27 = arith.addf %25, %26 : vector<1x10xf32>
    %28 = math.tanh %27 : vector<1x10xf32>
    %c2_12 = arith.constant 2 : index
    %c0_13 = arith.constant 0 : index
    %29 = vector.load %arg4[%c2_12, %c0_13] : memref<8x10xf32, #tpu.memory_space<vmem>>, vector<1x10xf32>
    tpu.vector_store %arg4[%c2_12, %c0_13], %28 {strides = array<i32>} : memref<8x10xf32, #tpu.memory_space<vmem>>, vector<1x10xf32>,
    %c3 = arith.constant 3 : index
    %30 = memref.load %arg0[%c3] : memref<9xf32, #tpu.memory_space<smem>>
    %31 = vector.broadcast %30 : f32 to vector<1x10xf32>
    %32 = arith.mulf %31, %1 : vector<1x10xf32>
    %33 = arith.addf %32, %2 : vector<1x10xf32>
    %cst_14 = arith.constant dense<0.000000e+00> : vector<1x10xf32>
    %34 = tpu.matmul %28, %0, %cst_14 {dimension_numbers = #tpu.dot_dimension_numbers<[1], [0], [0], [1], [0, 0, 1, 1], [], []>} : vector<1x10xf32>, vector<10x10xf32>, vector<1x10xf32> -> vector<1x10xf32>
    %35 = arith.addf %33, %34 : vector<1x10xf32>
    %36 = math.tanh %35 : vector<1x10xf32>
    %c3_15 = arith.constant 3 : index
    %c0_16 = arith.constant 0 : index
    %37 = vector.load %arg4[%c3_15, %c0_16] : memref<8x10xf32, #tpu.memory_space<vmem>>, vector<1x10xf32>
    tpu.vector_store %arg4[%c3_15, %c0_16], %36 {strides = array<i32>} : memref<8x10xf32, #tpu.memory_space<vmem>>, vector<1x10xf32>,
    %c4 = arith.constant 4 : index
    %38 = memref.load %arg0[%c4] : memref<9xf32, #tpu.memory_space<smem>>
    %39 = vector.broadcast %38 : f32 to vector<1x10xf32>
    %40 = arith.mulf %39, %1 : vector<1x10xf32>
    %41 = arith.addf %40, %2 : vector<1x10xf32>
    %cst_17 = arith.constant dense<0.000000e+00> : vector<1x10xf32>
    %42 = tpu.matmul %36, %0, %cst_17 {dimension_numbers = #tpu.dot_dimension_numbers<[1], [0], [0], [1], [0, 0, 1, 1], [], []>} : vector<1x10xf32>, vector<10x10xf32>, vector<1x10xf32> -> vector<1x10xf32>
    %43 = arith.addf %41, %42 : vector<1x10xf32>
    %44 = math.tanh %43 : vector<1x10xf32>
    %c4_18 = arith.constant 4 : index
    %c0_19 = arith.constant 0 : index
    %45 = vector.load %arg4[%c4_18, %c0_19] : memref<8x10xf32, #tpu.memory_space<vmem>>, vector<1x10xf32>
    tpu.vector_store %arg4[%c4_18, %c0_19], %44 {strides = array<i32>} : memref<8x10xf32, #tpu.memory_space<vmem>>, vector<1x10xf32>,
    %c5 = arith.constant 5 : index
    %46 = memref.load %arg0[%c5] : memref<9xf32, #tpu.memory_space<smem>>
    %47 = vector.broadcast %46 : f32 to vector<1x10xf32>
    %48 = arith.mulf %47, %1 : vector<1x10xf32>
    %49 = arith.addf %48, %2 : vector<1x10xf32>
    %cst_20 = arith.constant dense<0.000000e+00> : vector<1x10xf32>
    %50 = tpu.matmul %44, %0, %cst_20 {dimension_numbers = #tpu.dot_dimension_numbers<[1], [0], [0], [1], [0, 0, 1, 1], [], []>} : vector<1x10xf32>, vector<10x10xf32>, vector<1x10xf32> -> vector<1x10xf32>
    %51 = arith.addf %49, %50 : vector<1x10xf32>
    %52 = math.tanh %51 : vector<1x10xf32>
    %c5_21 = arith.constant 5 : index
    %c0_22 = arith.constant 0 : index
    %53 = vector.load %arg4[%c5_21, %c0_22] : memref<8x10xf32, #tpu.memory_space<vmem>>, vector<1x10xf32>
    tpu.vector_store %arg4[%c5_21, %c0_22], %52 {strides = array<i32>} : memref<8x10xf32, #tpu.memory_space<vmem>>, vector<1x10xf32>,
    %c6 = arith.constant 6 : index
    %54 = memref.load %arg0[%c6] : memref<9xf32, #tpu.memory_space<smem>>
    %55 = vector.broadcast %54 : f32 to vector<1x10xf32>
    %56 = arith.mulf %55, %1 : vector<1x10xf32>
    %57 = arith.addf %56, %2 : vector<1x10xf32>
    %cst_23 = arith.constant dense<0.000000e+00> : vector<1x10xf32>
    %58 = tpu.matmul %52, %0, %cst_23 {dimension_numbers = #tpu.dot_dimension_numbers<[1], [0], [0], [1], [0, 0, 1, 1], [], []>} : vector<1x10xf32>, vector<10x10xf32>, vector<1x10xf32> -> vector<1x10xf32>
    %59 = arith.addf %57, %58 : vector<1x10xf32>
    %60 = math.tanh %59 : vector<1x10xf32>
    %c6_24 = arith.constant 6 : index
    %c0_25 = arith.constant 0 : index
    %61 = vector.load %arg4[%c6_24, %c0_25] : memref<8x10xf32, #tpu.memory_space<vmem>>, vector<1x10xf32>
    tpu.vector_store %arg4[%c6_24, %c0_25], %60 {strides = array<i32>} : memref<8x10xf32, #tpu.memory_space<vmem>>, vector<1x10xf32>,
    %c7 = arith.constant 7 : index
    %62 = memref.load %arg0[%c7] : memref<9xf32, #tpu.memory_space<smem>>
    %63 = vector.broadcast %62 : f32 to vector<1x10xf32>
    %64 = arith.mulf %63, %1 : vector<1x10xf32>
    %65 = arith.addf %64, %2 : vector<1x10xf32>
    %cst_26 = arith.constant dense<0.000000e+00> : vector<1x10xf32>
    %66 = tpu.matmul %60, %0, %cst_26 {dimension_numbers = #tpu.dot_dimension_numbers<[1], [0], [0], [1], [0, 0, 1, 1], [], []>} : vector<1x10xf32>, vector<10x10xf32>, vector<1x10xf32> -> vector<1x10xf32>
    %67 = arith.addf %65, %66 : vector<1x10xf32>
    %68 = math.tanh %67 : vector<1x10xf32>
    %c7_27 = arith.constant 7 : index
    %c0_28 = arith.constant 0 : index
    %69 = vector.load %arg4[%c7_27, %c0_28] : memref<8x10xf32, #tpu.memory_space<vmem>>, vector<1x10xf32>
    tpu.vector_store %arg4[%c7_27, %c0_28], %68 {strides = array<i32>} : memref<8x10xf32, #tpu.memory_space<vmem>>, vector<1x10xf32>,
    %c0_29 = arith.constant 0 : index
    %c0_30 = arith.constant 0 : index
    %70 = vector.load %arg3[%c0_29, %c0_30] : memref<1x10xf32, #tpu.memory_space<vmem>>, vector<1x10xf32>
    tpu.vector_store %arg3[%c0_29, %c0_30], %68 {strides = array<i32>} : memref<1x10xf32, #tpu.memory_space<vmem>>, vector<1x10xf32>,
    %c0_31 = arith.constant 0 : index
    %c0_32 = arith.constant 0 : index
    %71 = vector.load %arg4[%c0_31, %c0_32] : memref<8x10xf32, #tpu.memory_space<vmem>>, vector<8x10xf32>
    %cst_33 = arith.constant dense<0.000000e+00> : vector<1x8xf32>
    %72 = tpu.matmul %3, %71, %cst_33 {dimension_numbers = #tpu.dot_dimension_numbers<[1], [1], [0], [0], [0, 0, 1, 0], [], []>} : vector<1x10xf32>, vector<8x10xf32>, vector<1x8xf32> -> vector<1x8xf32>
    %73 = vector.broadcast %5 : f32 to vector<1x8xf32>
    %74 = arith.addf %72, %73 : vector<1x8xf32>
    %c0_34 = arith.constant 0 : index
    %c0_35 = arith.constant 0 : index
    %75 = vector.load %arg2[%c0_34, %c0_35] : memref<1x8xf32, #tpu.memory_space<vmem>>, vector<1x8xf32>
    tpu.vector_store %arg2[%c0_34, %c0_35], %74 {strides = array<i32>} : memref<1x8xf32, #tpu.memory_space<vmem>>, vector<1x8xf32>,
    return
  }
}

</mosaic_0001>

<llo_original>
// kernel: tpu_custom_call.1
$region0: #{tpu_custom_call.1}
  #allocation0 [shape = 'u32[]', space=smem, size = 0x4, offset = 0x4, fixed_abs, tag = 'smem constant byte address 0x4 - core index']
  #allocation1 [shape = 'u32[144,128]{1,0:T(1,128)}', space=vmem, size = 0x12000, scoped, tag = 'internal scratch']
  #allocation2 [shape = 'f32[8,10]{1,0:T(8,128)}', space=vmem, size = 0x1000, scoped, tag = 'scratch operand']
  %s0 = inlined_call_operand.hbm [shape: f32[9], index: 0, kind: input, shape index: {}]
  %s1 = inlined_call_operand.hbm [shape: f32[14,10], index: 1, kind: input, shape index: {}]
  %s2 = inlined_call_operand.hbm [shape: f32[1,8], index: 2, kind: output, shape index: {0}]
  %s3 = inlined_call_operand.hbm [shape: f32[1,10], index: 3, kind: output, shape index: {1}]
  %4 = xla_tuple %s2, %s3
  %s5 = sld [smem:[#allocation0]]
  $region34: #{tpu_custom_call.1} parent=0
    _
  %s7 = ssub.s32 1, %s5
  %s8 = scalar_select 0, %s7, %s5
  $region1: #{tpu_custom_call.1} parent=0
    #allocation3 [shape = 'u8[512]{0}', space=smem, size = 0x200, scoped, tag = 'input window, operand 0, single buffered']
    #allocation4 [shape = 's32[1]{0}', space=sflag, size = 0x4, scoped, tag = 'scoped memory for tpu_custom_call.1']
    #allocation5 [shape = 's32[1]{0}', space=sflag, size = 0x4, scoped, tag = 'scoped memory for tpu_custom_call.1']
    #allocation6 [shape = 's32[1]{0}', space=sflag, size = 0x4, scoped, tag = 'scoped memory for tpu_custom_call.1']
    #allocation7 [shape = 'u8[8192]{0}', space=vmem, size = 0x2000, scoped, tag = 'input window, operand 1, single buffered']
    #allocation8 [shape = 'u8[512]{0}', space=vmem, size = 0x400, scoped, tag = 'output window, operand 0, single buffered']
    #allocation9 [shape = 'u8[512]{0}', space=vmem, size = 0x400, scoped, tag = 'output window, operand 1, single buffered']
    #allocation10 [shape = 's32[1]{0}', space=sflag, size = 0x4, scoped, tag = 'scoped memory for tpu_custom_call.1']
    %9 = vsyncpa [#allocation6], 0
    %10 = vsyncpa [#allocation4], 0
    %11 = vsyncpa [#allocation5], 0
    %12 = vsyncpa [#allocation10], 0
    // Predicated region
    $region2: #{tpu_custom_call.1} parent=1 // pred_check
      _
    $region3: #{tpu_custom_call.1} parent=1 // pred_check_branch
      %14 = sbr.rel (0) target = $region5
    $region4: #{tpu_custom_call.1} parent=1 // pred_region
      %s16 = ssub.s32 16, 16
      %17 = vsyncadd [#allocation6], %s16
      %20 = dma.hbm_to_smem %s0, 16, [#allocation3], [#allocation6]
    $region5: #{tpu_custom_call.1} parent=1 // pred_fallthru
      _
    // Predicated region
    $region6: #{tpu_custom_call.1} parent=1 // pred_check
      _
    $region7: #{tpu_custom_call.1} parent=1 // pred_check_branch
      %22 = sbr.rel (0) target = $region9
    $region8: #{tpu_custom_call.1} parent=1 // pred_region
      %s24 = ssub.s32 256, 256
      %25 = vsyncadd [#allocation4], %s24
      %s26 = sshll.u32 [#allocation7], 4
      %s27 = int_to_ptr.vmem [resolvable:$true] %s26
      %32 = dma.hbm_to_vmem [thread:$0]  %s1, 256, %s27, [#allocation4], 128, 128, 8
    $region9: #{tpu_custom_call.1} parent=1 // pred_fallthru
      _
    // Predicated region
    $region10: #{tpu_custom_call.1} parent=1 // pred_check
      _
    $region11: #{tpu_custom_call.1} parent=1 // pred_check_branch
      %34 = sbr.rel (0) target = $region13
    $region12: #{tpu_custom_call.1} parent=1 // pred_region
      %35 = dma.done [#allocation6], 16
    $region13: #{tpu_custom_call.1} parent=1 // pred_fallthru
      _
    // Predicated region
    $region14: #{tpu_custom_call.1} parent=1 // pred_check
      _
    $region15: #{tpu_custom_call.1} parent=1 // pred_check_branch
      %37 = sbr.rel (0) target = $region17
    $region16: #{tpu_custom_call.1} parent=1 // pred_region
      %38 = dma.done [#allocation4], 256
    $region17: #{tpu_custom_call.1} parent=1 // pred_fallthru
      _
    %39 = sfence
    %v40 = vld [vmem:[#allocation7] sm:$0xff]
    %v41 = vld [vmem:[#allocation7 + $0x8] sm:$0x3]
    %v42 = vld [vmem:[#allocation7 + $0xa] sm:$0x1]
    %v43 = vld [vmem:[#allocation7 + $0xb] sm:$0x1]
    %v44 = vld [vmem:[#allocation7 + $0xc] sm:$0x1]
    %v45 = vld [vmem:[#allocation7 + $0xd] sm:$0x1]
    %s46 = sld [smem:[#allocation3 + $0x8]]
    %s47 = sld [smem:[#allocation3]]
    %v48 = vstv %s47
    %v49 = vmul.f32 %v48, %v42
    %v50 = vadd.f32 %v49, %v43
    %vm51 = vcmask 80896
    %v53 = vsel %vm51, %v45, 0
    %vm55 = vcmask 1041408
    %v57 = vsel %vm55, %v41, 0
    %59 = vmatprep.subr.mxu0 0.0
    %60 = vmatpush1.msra.mxu0 %v40
    %61 = vmatprep.subr.mxu0 0.0
    %62 = vmatpush1.msra.mxu0 %v57
    %63 = vmatprep.subr.mxu0 0.0
    %64 = vmatpush1.msra.mxu0 0.0
    %65 = vmatprep.subr.mxu0 0.0
    %66 = vmatpush1.msra.mxu0 0.0
    %67 = vmatprep.subr.mxu0 0.0
    %68 = vmatpush1.msra.mxu0 0.0
    %69 = vmatprep.subr.mxu0 0.0
    %70 = vmatpush1.msra.mxu0 0.0
    %71 = vmatprep.subr.mxu0 0.0
    %72 = vmatpush1.msra.mxu0 0.0
    %73 = vmatprep.subr.mxu0 0.0
    %74 = vmatpush1.msra.mxu0 0.0
    %75 = vmatprep.subr.mxu0 0.0
    %76 = vmatpush1.msra.mxu0 0.0
    %77 = vmatprep.subr.mxu0 0.0
    %78 = vmatpush1.msra.mxu0 0.0
    %79 = vmatprep.subr.mxu0 0.0
    %80 = vmatpush1.msra.mxu0 0.0
    %81 = vmatprep.subr.mxu0 0.0
    %82 = vmatpush1.msra.mxu0 0.0
    %83 = vmatprep.subr.mxu0 0.0
    %84 = vmatpush1.msra.mxu0 0.0
    %85 = vmatprep.subr.mxu0 0.0
    %86 = vmatpush1.msra.mxu0 0.0
    %87 = vmatprep.subr.mxu0 0.0
    %88 = vmatpush1.msra.mxu0 0.0
    %89 = vmatprep.subr.mxu0 0.0
    %90 = vmatpush1.msra.mxu0 0.0
    %91 = vmatprep.subr.mxu0 0.0
    %92 = vmatpush1.msra.mxu0 0.0
    %93 = vmatprep.subr.mxu0 0.0
    %94 = vmatpush1.msra.mxu0 0.0
    %95 = vmatprep.subr.mxu0 0.0
    %96 = vmatpush1.msra.mxu0 0.0
    %97 = vmatprep.subr.mxu0 0.0
    %98 = vmatpush1.msra.mxu0 0.0
    %99 = vmatprep.subr.mxu0 0.0
    %100 = vmatpush1.msra.mxu0 0.0
    %101 = vmatprep.subr.mxu0 0.0
    %102 = vmatpush1.msra.mxu0 0.0
    %103 = vmatprep.subr.mxu0 0.0
    %104 = vmatpush1.msra.mxu0 0.0
    %105 = vmatprep.subr.mxu0 0.0
    %106 = vmatpush1.msra.mxu0 0.0
    %107 = vmatprep.subr.mxu0 0.0
    %108 = vmatpush1.msra.mxu0 0.0
    %109 = vmatprep.subr.mxu0 0.0
    %110 = vmatpush1.msra.mxu0 0.0
    %111 = vmatprep.subr.mxu0 0.0
    %112 = vmatpush1.msra.mxu0 0.0
    %113 = vmatprep.subr.mxu0 0.0
    %114 = vmatpush1.msra.mxu0 0.0
    %115 = vmatprep.subr.mxu0 0.0
    %116 = vmatpush1.msra.mxu0 0.0
    %117 = vmatprep.subr.mxu0 0.0
    %118 = vmatpush1.msra.mxu0 0.0
    %119 = vmatprep.subr.mxu0 0.0
    %120 = vmatpush1.msra.mxu0 0.0
    %121 = vmatprep.subr.mxu0 0.0
    %122 = vmatpush1.msra.mxu0 0.0
    %123 = vmatprep.mubr.f32.mxu0 0.0
    %124 = vmatmul.mubr.f32.gmra.mrb[0].mxu0 %v53
    %v125 = vpop.f32.mrb[0].mxu0
    %v126 = vadd.f32 0.0, %v125
    %v127 = vpop.f32.mrb[0].mxu0
    %128 = vdwg.mxu0
    %v129 = vadd.f32 %v50, %v126
    %v130 = vtanh.pop %v129
    %vm131 = vcmask 73728
    %132 = vst.msk [vmem:[#allocation2] sm:$0x1] %vm131, %v130
    %s133 = sld [smem:[#allocation3 + $0x1]]
    %v134 = vstv %s133
    %v135 = vmul.f32 %v134, %v42
    %v136 = vadd.f32 %v135, %v43
    %v138 = vsel %vm51, %v130, 0
    %140 = vmatprep.subr.mxu0 0.0
    %141 = vmatpush1.msra.mxu0 %v40
    %142 = vmatprep.subr.mxu0 0.0
    %143 = vmatpush1.msra.mxu0 %v57
    %144 = vmatprep.subr.mxu0 0.0
    %145 = vmatpush1.msra.mxu0 0.0
    %146 = vmatprep.subr.mxu0 0.0
    %147 = vmatpush1.msra.mxu0 0.0
    %148 = vmatprep.subr.mxu0 0.0
    %149 = vmatpush1.msra.mxu0 0.0
    %150 = vmatprep.subr.mxu0 0.0
    %151 = vmatpush1.msra.mxu0 0.0
    %152 = vmatprep.subr.mxu0 0.0
    %153 = vmatpush1.msra.mxu0 0.0
    %154 = vmatprep.subr.mxu0 0.0
    %155 = vmatpush1.msra.mxu0 0.0
    %156 = vmatprep.subr.mxu0 0.0
    %157 = vmatpush1.msra.mxu0 0.0
    %158 = vmatprep.subr.mxu0 0.0
    %159 = vmatpush1.msra.mxu0 0.0
    %160 = vmatprep.subr.mxu0 0.0
    %161 = vmatpush1.msra.mxu0 0.0
    %162 = vmatprep.subr.mxu0 0.0
    %163 = vmatpush1.msra.mxu0 0.0
    %164 = vmatprep.subr.mxu0 0.0
    %165 = vmatpush1.msra.mxu0 0.0
    %166 = vmatprep.subr.mxu0 0.0
    %167 = vmatpush1.msra.mxu0 0.0
    %168 = vmatprep.subr.mxu0 0.0
    %169 = vmatpush1.msra.mxu0 0.0
    %170 = vmatprep.subr.mxu0 0.0
    %171 = vmatpush1.msra.mxu0 0.0
    %172 = vmatprep.subr.mxu0 0.0
    %173 = vmatpush1.msra.mxu0 0.0
    %174 = vmatprep.subr.mxu0 0.0
    %175 = vmatpush1.msra.mxu0 0.0
    %176 = vmatprep.subr.mxu0 0.0
    %177 = vmatpush1.msra.mxu0 0.0
    %178 = vmatprep.subr.mxu0 0.0
    %179 = vmatpush1.msra.mxu0 0.0
    %180 = vmatprep.subr.mxu0 0.0
    %181 = vmatpush1.msra.mxu0 0.0
    %182 = vmatprep.subr.mxu0 0.0
    %183 = vmatpush1.msra.mxu0 0.0
    %184 = vmatprep.subr.mxu0 0.0
    %185 = vmatpush1.msra.mxu0 0.0
    %186 = vmatprep.subr.mxu0 0.0
    %187 = vmatpush1.msra.mxu0 0.0
    %188 = vmatprep.subr.mxu0 0.0
    %189 = vmatpush1.msra.mxu0 0.0
    %190 = vmatprep.subr.mxu0 0.0
    %191 = vmatpush1.msra.mxu0 0.0
    %192 = vmatprep.subr.mxu0 0.0
    %193 = vmatpush1.msra.mxu0 0.0
    %194 = vmatprep.subr.mxu0 0.0
    %195 = vmatpush1.msra.mxu0 0.0
    %196 = vmatprep.subr.mxu0 0.0
    %197 = vmatpush1.msra.mxu0 0.0
    %198 = vmatprep.subr.mxu0 0.0
    %199 = vmatpush1.msra.mxu0 0.0
    %200 = vmatprep.subr.mxu0 0.0
    %201 = vmatpush1.msra.mxu0 0.0
    %202 = vmatprep.subr.mxu0 0.0
    %203 = vmatpush1.msra.mxu0 0.0
    %204 = vmatprep.mubr.f32.mxu0 0.0
    %205 = vmatmul.mubr.f32.gmra.mrb[0].mxu0 %v138
    %v206 = vpop.f32.mrb[0].mxu0
    %v207 = vadd.f32 0.0, %v206
    %v208 = vpop.f32.mrb[0].mxu0
    %209 = vdwg.mxu0
    %v210 = vadd.f32 %v136, %v207
    %v211 = vtanh.pop %v210
    %212 = vst.msk [vmem:[#allocation2 + $0x1] sm:$0x1] %vm131, %v211
    %s213 = sld [smem:[#allocation3 + $0x2]]
    %v214 = vstv %s213
    %v215 = vmul.f32 %v214, %v42
    %v216 = vadd.f32 %v215, %v43
    %v218 = vsel %vm51, %v211, 0
    %220 = vmatprep.subr.mxu0 0.0
    %221 = vmatpush1.msra.mxu0 %v40
    %222 = vmatprep.subr.mxu0 0.0
    %223 = vmatpush1.msra.mxu0 %v57
    %224 = vmatprep.subr.mxu0 0.0
    %225 = vmatpush1.msra.mxu0 0.0
    %226 = vmatprep.subr.mxu0 0.0
    %227 = vmatpush1.msra.mxu0 0.0
    %228 = vmatprep.subr.mxu0 0.0
    %229 = vmatpush1.msra.mxu0 0.0
    %230 = vmatprep.subr.mxu0 0.0
    %231 = vmatpush1.msra.mxu0 0.0
    %232 = vmatprep.subr.mxu0 0.0
    %233 = vmatpush1.msra.mxu0 0.0
    %234 = vmatprep.subr.mxu0 0.0
    %235 = vmatpush1.msra.mxu0 0.0
    %236 = vmatprep.subr.mxu0 0.0
    %237 = vmatpush1.msra.mxu0 0.0
    %238 = vmatprep.subr.mxu0 0.0
    %239 = vmatpush1.msra.mxu0 0.0
    %240 = vmatprep.subr.mxu0 0.0
    %241 = vmatpush1.msra.mxu0 0.0
    %242 = vmatprep.subr.mxu0 0.0
    %243 = vmatpush1.msra.mxu0 0.0
    %244 = vmatprep.subr.mxu0 0.0
    %245 = vmatpush1.msra.mxu0 0.0
    %246 = vmatprep.subr.mxu0 0.0
    %247 = vmatpush1.msra.mxu0 0.0
    %248 = vmatprep.subr.mxu0 0.0
    %249 = vmatpush1.msra.mxu0 0.0
    %250 = vmatprep.subr.mxu0 0.0
    %251 = vmatpush1.msra.mxu0 0.0
    %252 = vmatprep.subr.mxu0 0.0
    %253 = vmatpush1.msra.mxu0 0.0
    %254 = vmatprep.subr.mxu0 0.0
    %255 = vmatpush1.msra.mxu0 0.0
    %256 = vmatprep.subr.mxu0 0.0
    %257 = vmatpush1.msra.mxu0 0.0
    %258 = vmatprep.subr.mxu0 0.0
    %259 = vmatpush1.msra.mxu0 0.0
    %260 = vmatprep.subr.mxu0 0.0
    %261 = vmatpush1.msra.mxu0 0.0
    %262 = vmatprep.subr.mxu0 0.0
    %263 = vmatpush1.msra.mxu0 0.0
    %264 = vmatprep.subr.mxu0 0.0
    %265 = vmatpush1.msra.mxu0 0.0
    %266 = vmatprep.subr.mxu0 0.0
    %267 = vmatpush1.msra.mxu0 0.0
    %268 = vmatprep.subr.mxu0 0.0
    %269 = vmatpush1.msra.mxu0 0.0
    %270 = vmatprep.subr.mxu0 0.0
    %271 = vmatpush1.msra.mxu0 0.0
    %272 = vmatprep.subr.mxu0 0.0
    %273 = vmatpush1.msra.mxu0 0.0
    %274 = vmatprep.subr.mxu0 0.0
    %275 = vmatpush1.msra.mxu0 0.0
    %276 = vmatprep.subr.mxu0 0.0
    %277 = vmatpush1.msra.mxu0 0.0
    %278 = vmatprep.subr.mxu0 0.0
    %279 = vmatpush1.msra.mxu0 0.0
    %280 = vmatprep.subr.mxu0 0.0
    %281 = vmatpush1.msra.mxu0 0.0
    %282 = vmatprep.subr.mxu0 0.0
    %283 = vmatpush1.msra.mxu0 0.0
    %284 = vmatprep.mubr.f32.mxu0 0.0
    %285 = vmatmul.mubr.f32.gmra.mrb[0].mxu0 %v218
    %v286 = vpop.f32.mrb[0].mxu0
    %v287 = vadd.f32 0.0, %v286
    %v288 = vpop.f32.mrb[0].mxu0
    %289 = vdwg.mxu0
    %v290 = vadd.f32 %v216, %v287
    %v291 = vtanh.pop %v290
    %292 = vst.msk [vmem:[#allocation2 + $0x2] sm:$0x1] %vm131, %v291
    %s293 = sld [smem:[#allocation3 + $0x3]]
    %v294 = vstv %s293
    %v295 = vmul.f32 %v294, %v42
    %v296 = vadd.f32 %v295, %v43
    %v298 = vsel %vm51, %v291, 0
    %300 = vmatprep.subr.mxu0 0.0
    %301 = vmatpush1.msra.mxu0 %v40
    %302 = vmatprep.subr.mxu0 0.0
    %303 = vmatpush1.msra.mxu0 %v57
    %304 = vmatprep.subr.mxu0 0.0
    %305 = vmatpush1.msra.mxu0 0.0
    %306 = vmatprep.subr.mxu0 0.0
    %307 = vmatpush1.msra.mxu0 0.0
    %308 = vmatprep.subr.mxu0 0.0
    %309 = vmatpush1.msra.mxu0 0.0
    %310 = vmatprep.subr.mxu0 0.0
    %311 = vmatpush1.msra.mxu0 0.0
    %312 = vmatprep.subr.mxu0 0.0
    %313 = vmatpush1.msra.mxu0 0.0
    %314 = vmatprep.subr.mxu0 0.0
    %315 = vmatpush1.msra.mxu0 0.0
    %316 = vmatprep.subr.mxu0 0.0
    %317 = vmatpush1.msra.mxu0 0.0
    %318 = vmatprep.subr.mxu0 0.0
    %319 = vmatpush1.msra.mxu0 0.0
    %320 = vmatprep.subr.mxu0 0.0
    %321 = vmatpush1.msra.mxu0 0.0
    %322 = vmatprep.subr.mxu0 0.0
    %323 = vmatpush1.msra.mxu0 0.0
    %324 = vmatprep.subr.mxu0 0.0
    %325 = vmatpush1.msra.mxu0 0.0
    %326 = vmatprep.subr.mxu0 0.0
    %327 = vmatpush1.msra.mxu0 0.0
    %328 = vmatprep.subr.mxu0 0.0
    %329 = vmatpush1.msra.mxu0 0.0
    %330 = vmatprep.subr.mxu0 0.0
    %331 = vmatpush1.msra.mxu0 0.0
    %332 = vmatprep.subr.mxu0 0.0
    %333 = vmatpush1.msra.mxu0 0.0
    %334 = vmatprep.subr.mxu0 0.0
    %335 = vmatpush1.msra.mxu0 0.0
    %336 = vmatprep.subr.mxu0 0.0
    %337 = vmatpush1.msra.mxu0 0.0
    %338 = vmatprep.subr.mxu0 0.0
    %339 = vmatpush1.msra.mxu0 0.0
    %340 = vmatprep.subr.mxu0 0.0
    %341 = vmatpush1.msra.mxu0 0.0
    %342 = vmatprep.subr.mxu0 0.0
    %343 = vmatpush1.msra.mxu0 0.0
    %344 = vmatprep.subr.mxu0 0.0
    %345 = vmatpush1.msra.mxu0 0.0
    %346 = vmatprep.subr.mxu0 0.0
    %347 = vmatpush1.msra.mxu0 0.0
    %348 = vmatprep.subr.mxu0 0.0
    %349 = vmatpush1.msra.mxu0 0.0
    %350 = vmatprep.subr.mxu0 0.0
    %351 = vmatpush1.msra.mxu0 0.0
    %352 = vmatprep.subr.mxu0 0.0
    %353 = vmatpush1.msra.mxu0 0.0
    %354 = vmatprep.subr.mxu0 0.0
    %355 = vmatpush1.msra.mxu0 0.0
    %356 = vmatprep.subr.mxu0 0.0
    %357 = vmatpush1.msra.mxu0 0.0
    %358 = vmatprep.subr.mxu0 0.0
    %359 = vmatpush1.msra.mxu0 0.0
    %360 = vmatprep.subr.mxu0 0.0
    %361 = vmatpush1.msra.mxu0 0.0
    %362 = vmatprep.subr.mxu0 0.0
    %363 = vmatpush1.msra.mxu0 0.0
    %364 = vmatprep.mubr.f32.mxu0 0.0
    %365 = vmatmul.mubr.f32.gmra.mrb[0].mxu0 %v298
    %v366 = vpop.f32.mrb[0].mxu0
    %v367 = vadd.f32 0.0, %v366
    %v368 = vpop.f32.mrb[0].mxu0
    %369 = vdwg.mxu0
    %v370 = vadd.f32 %v296, %v367
    %v371 = vtanh.pop %v370
    %372 = vst.msk [vmem:[#allocation2 + $0x3] sm:$0x1] %vm131, %v371
    %s373 = sld [smem:[#allocation3 + $0x4]]
    %v374 = vstv %s373
    %v375 = vmul.f32 %v374, %v42
    %v376 = vadd.f32 %v375, %v43
    %v378 = vsel %vm51, %v371, 0
    %380 = vmatprep.subr.mxu0 0.0
    %381 = vmatpush1.msra.mxu0 %v40
    %382 = vmatprep.subr.mxu0 0.0
    %383 = vmatpush1.msra.mxu0 %v57
    %384 = vmatprep.subr.mxu0 0.0
    %385 = vmatpush1.msra.mxu0 0.0
    %386 = vmatprep.subr.mxu0 0.0
    %387 = vmatpush1.msra.mxu0 0.0
    %388 = vmatprep.subr.mxu0 0.0
    %389 = vmatpush1.msra.mxu0 0.0
    %390 = vmatprep.subr.mxu0 0.0
    %391 = vmatpush1.msra.mxu0 0.0
    %392 = vmatprep.subr.mxu0 0.0
    %393 = vmatpush1.msra.mxu0 0.0
    %394 = vmatprep.subr.mxu0 0.0
    %395 = vmatpush1.msra.mxu0 0.0
    %396 = vmatprep.subr.mxu0 0.0
    %397 = vmatpush1.msra.mxu0 0.0
    %398 = vmatprep.subr.mxu0 0.0
    %399 = vmatpush1.msra.mxu0 0.0
    %400 = vmatprep.subr.mxu0 0.0
    %401 = vmatpush1.msra.mxu0 0.0
    %402 = vmatprep.subr.mxu0 0.0
    %403 = vmatpush1.msra.mxu0 0.0
    %404 = vmatprep.subr.mxu0 0.0
    %405 = vmatpush1.msra.mxu0 0.0
    %406 = vmatprep.subr.mxu0 0.0
    %407 = vmatpush1.msra.mxu0 0.0
    %408 = vmatprep.subr.mxu0 0.0
    %409 = vmatpush1.msra.mxu0 0.0
    %410 = vmatprep.subr.mxu0 0.0
    %411 = vmatpush1.msra.mxu0 0.0
    %412 = vmatprep.subr.mxu0 0.0
    %413 = vmatpush1.msra.mxu0 0.0
    %414 = vmatprep.subr.mxu0 0.0
    %415 = vmatpush1.msra.mxu0 0.0
    %416 = vmatprep.subr.mxu0 0.0
    %417 = vmatpush1.msra.mxu0 0.0
    %418 = vmatprep.subr.mxu0 0.0
    %419 = vmatpush1.msra.mxu0 0.0
    %420 = vmatprep.subr.mxu0 0.0
    %421 = vmatpush1.msra.mxu0 0.0
    %422 = vmatprep.subr.mxu0 0.0
    %423 = vmatpush1.msra.mxu0 0.0
    %424 = vmatprep.subr.mxu0 0.0
    %425 = vmatpush1.msra.mxu0 0.0
    %426 = vmatprep.subr.mxu0 0.0
    %427 = vmatpush1.msra.mxu0 0.0
    %428 = vmatprep.subr.mxu0 0.0
    %429 = vmatpush1.msra.mxu0 0.0
    %430 = vmatprep.subr.mxu0 0.0
    %431 = vmatpush1.msra.mxu0 0.0
    %432 = vmatprep.subr.mxu0 0.0
    %433 = vmatpush1.msra.mxu0 0.0
    %434 = vmatprep.subr.mxu0 0.0
    %435 = vmatpush1.msra.mxu0 0.0
    %436 = vmatprep.subr.mxu0 0.0
    %437 = vmatpush1.msra.mxu0 0.0
    %438 = vmatprep.subr.mxu0 0.0
    %439 = vmatpush1.msra.mxu0 0.0
    %440 = vmatprep.subr.mxu0 0.0
    %441 = vmatpush1.msra.mxu0 0.0
    %442 = vmatprep.subr.mxu0 0.0
    %443 = vmatpush1.msra.mxu0 0.0
    %444 = vmatprep.mubr.f32.mxu0 0.0
    %445 = vmatmul.mubr.f32.gmra.mrb[0].mxu0 %v378
    %v446 = vpop.f32.mrb[0].mxu0
    %v447 = vadd.f32 0.0, %v446
    %v448 = vpop.f32.mrb[0].mxu0
    %449 = vdwg.mxu0
    %v450 = vadd.f32 %v376, %v447
    %v451 = vtanh.pop %v450
    %452 = vst.msk [vmem:[#allocation2 + $0x4] sm:$0x1] %vm131, %v451
    %s453 = sld [smem:[#allocation3 + $0x5]]
    %v454 = vstv %s453
    %v455 = vmul.f32 %v454, %v42
    %v456 = vadd.f32 %v455, %v43
    %v458 = vsel %vm51, %v451, 0
    %460 = vmatprep.subr.mxu0 0.0
    %461 = vmatpush1.msra.mxu0 %v40
    %462 = vmatprep.subr.mxu0 0.0
    %463 = vmatpush1.msra.mxu0 %v57
    %464 = vmatprep.subr.mxu0 0.0
    %465 = vmatpush1.msra.mxu0 0.0
    %466 = vmatprep.subr.mxu0 0.0
    %467 = vmatpush1.msra.mxu0 0.0
    %468 = vmatprep.subr.mxu0 0.0
    %469 = vmatpush1.msra.mxu0 0.0
    %470 = vmatprep.subr.mxu0 0.0
    %471 = vmatpush1.msra.mxu0 0.0
    %472 = vmatprep.subr.mxu0 0.0
    %473 = vmatpush1.msra.mxu0 0.0
    %474 = vmatprep.subr.mxu0 0.0
    %475 = vmatpush1.msra.mxu0 0.0
    %476 = vmatprep.subr.mxu0 0.0
    %477 = vmatpush1.msra.mxu0 0.0
    %478 = vmatprep.subr.mxu0 0.0
    %479 = vmatpush1.msra.mxu0 0.0
    %480 = vmatprep.subr.mxu0 0.0
    %481 = vmatpush1.msra.mxu0 0.0
    %482 = vmatprep.subr.mxu0 0.0
    %483 = vmatpush1.msra.mxu0 0.0
    %484 = vmatprep.subr.mxu0 0.0
    %485 = vmatpush1.msra.mxu0 0.0
    %486 = vmatprep.subr.mxu0 0.0
    %487 = vmatpush1.msra.mxu0 0.0
    %488 = vmatprep.subr.mxu0 0.0
    %489 = vmatpush1.msra.mxu0 0.0
    %490 = vmatprep.subr.mxu0 0.0
    %491 = vmatpush1.msra.mxu0 0.0
    %492 = vmatprep.subr.mxu0 0.0
    %493 = vmatpush1.msra.mxu0 0.0
    %494 = vmatprep.subr.mxu0 0.0
    %495 = vmatpush1.msra.mxu0 0.0
    %496 = vmatprep.subr.mxu0 0.0
    %497 = vmatpush1.msra.mxu0 0.0
    %498 = vmatprep.subr.mxu0 0.0
    %499 = vmatpush1.msra.mxu0 0.0
    %500 = vmatprep.subr.mxu0 0.0
    %501 = vmatpush1.msra.mxu0 0.0
    %502 = vmatprep.subr.mxu0 0.0
    %503 = vmatpush1.msra.mxu0 0.0
    %504 = vmatprep.subr.mxu0 0.0
    %505 = vmatpush1.msra.mxu0 0.0
    %506 = vmatprep.subr.mxu0 0.0
    %507 = vmatpush1.msra.mxu0 0.0
    %508 = vmatprep.subr.mxu0 0.0
    %509 = vmatpush1.msra.mxu0 0.0
    %510 = vmatprep.subr.mxu0 0.0
    %511 = vmatpush1.msra.mxu0 0.0
    %512 = vmatprep.subr.mxu0 0.0
    %513 = vmatpush1.msra.mxu0 0.0
    %514 = vmatprep.subr.mxu0 0.0
    %515 = vmatpush1.msra.mxu0 0.0
    %516 = vmatprep.subr.mxu0 0.0
    %517 = vmatpush1.msra.mxu0 0.0
    %518 = vmatprep.subr.mxu0 0.0
    %519 = vmatpush1.msra.mxu0 0.0
    %520 = vmatprep.subr.mxu0 0.0
    %521 = vmatpush1.msra.mxu0 0.0
    %522 = vmatprep.subr.mxu0 0.0
    %523 = vmatpush1.msra.mxu0 0.0
    %524 = vmatprep.mubr.f32.mxu0 0.0
    %525 = vmatmul.mubr.f32.gmra.mrb[0].mxu0 %v458
    %v526 = vpop.f32.mrb[0].mxu0
    %v527 = vadd.f32 0.0, %v526
    %v528 = vpop.f32.mrb[0].mxu0
    %529 = vdwg.mxu0
    %v530 = vadd.f32 %v456, %v527
    %v531 = vtanh.pop %v530
    %532 = vst.msk [vmem:[#allocation2 + $0x5] sm:$0x1] %vm131, %v531
    %s533 = sld [smem:[#allocation3 + $0x6]]
    %v534 = vstv %s533
    %v535 = vmul.f32 %v534, %v42
    %v536 = vadd.f32 %v535, %v43
    %v538 = vsel %vm51, %v531, 0
    %540 = vmatprep.subr.mxu0 0.0
    %541 = vmatpush1.msra.mxu0 %v40
    %542 = vmatprep.subr.mxu0 0.0
    %543 = vmatpush1.msra.mxu0 %v57
    %544 = vmatprep.subr.mxu0 0.0
    %545 = vmatpush1.msra.mxu0 0.0
    %546 = vmatprep.subr.mxu0 0.0
    %547 = vmatpush1.msra.mxu0 0.0
    %548 = vmatprep.subr.mxu0 0.0
    %549 = vmatpush1.msra.mxu0 0.0
    %550 = vmatprep.subr.mxu0 0.0
    %551 = vmatpush1.msra.mxu0 0.0
    %552 = vmatprep.subr.mxu0 0.0
    %553 = vmatpush1.msra.mxu0 0.0
    %554 = vmatprep.subr.mxu0 0.0
    %555 = vmatpush1.msra.mxu0 0.0
    %556 = vmatprep.subr.mxu0 0.0
    %557 = vmatpush1.msra.mxu0 0.0
    %558 = vmatprep.subr.mxu0 0.0
    %559 = vmatpush1.msra.mxu0 0.0
    %560 = vmatprep.subr.mxu0 0.0
    %561 = vmatpush1.msra.mxu0 0.0
    %562 = vmatprep.subr.mxu0 0.0
    %563 = vmatpush1.msra.mxu0 0.0
    %564 = vmatprep.subr.mxu0 0.0
    %565 = vmatpush1.msra.mxu0 0.0
    %566 = vmatprep.subr.mxu0 0.0
    %567 = vmatpush1.msra.mxu0 0.0
    %568 = vmatprep.subr.mxu0 0.0
    %569 = vmatpush1.msra.mxu0 0.0
    %570 = vmatprep.subr.mxu0 0.0
    %571 = vmatpush1.msra.mxu0 0.0
    %572 = vmatprep.subr.mxu0 0.0
    %573 = vmatpush1.msra.mxu0 0.0
    %574 = vmatprep.subr.mxu0 0.0
    %575 = vmatpush1.msra.mxu0 0.0
    %576 = vmatprep.subr.mxu0 0.0
    %577 = vmatpush1.msra.mxu0 0.0
    %578 = vmatprep.subr.mxu0 0.0
    %579 = vmatpush1.msra.mxu0 0.0
    %580 = vmatprep.subr.mxu0 0.0
    %581 = vmatpush1.msra.mxu0 0.0
    %582 = vmatprep.subr.mxu0 0.0
    %583 = vmatpush1.msra.mxu0 0.0
    %584 = vmatprep.subr.mxu0 0.0
    %585 = vmatpush1.msra.mxu0 0.0
    %586 = vmatprep.subr.mxu0 0.0
    %587 = vmatpush1.msra.mxu0 0.0
    %588 = vmatprep.subr.mxu0 0.0
    %589 = vmatpush1.msra.mxu0 0.0
    %590 = vmatprep.subr.mxu0 0.0
    %591 = vmatpush1.msra.mxu0 0.0
    %592 = vmatprep.subr.mxu0 0.0
    %593 = vmatpush1.msra.mxu0 0.0
    %594 = vmatprep.subr.mxu0 0.0
    %595 = vmatpush1.msra.mxu0 0.0
    %596 = vmatprep.subr.mxu0 0.0
    %597 = vmatpush1.msra.mxu0 0.0
    %598 = vmatprep.subr.mxu0 0.0
    %599 = vmatpush1.msra.mxu0 0.0
    %600 = vmatprep.subr.mxu0 0.0
    %601 = vmatpush1.msra.mxu0 0.0
    %602 = vmatprep.subr.mxu0 0.0
    %603 = vmatpush1.msra.mxu0 0.0
    %604 = vmatprep.mubr.f32.mxu0 0.0
    %605 = vmatmul.mubr.f32.gmra.mrb[0].mxu0 %v538
    %v606 = vpop.f32.mrb[0].mxu0
    %v607 = vadd.f32 0.0, %v606
    %v608 = vpop.f32.mrb[0].mxu0
    %609 = vdwg.mxu0
    %v610 = vadd.f32 %v536, %v607
    %v611 = vtanh.pop %v610
    %612 = vst.msk [vmem:[#allocation2 + $0x6] sm:$0x1] %vm131, %v611
    %s613 = sld [smem:[#allocation3 + $0x7]]
    %v614 = vstv %s613
    %v615 = vmul.f32 %v614, %v42
    %v616 = vadd.f32 %v615, %v43
    %v618 = vsel %vm51, %v611, 0
    %620 = vmatprep.subr.mxu0 0.0
    %621 = vmatpush1.msra.mxu0 %v40
    %622 = vmatprep.subr.mxu0 0.0
    %623 = vmatpush1.msra.mxu0 %v57
    %624 = vmatprep.subr.mxu0 0.0
    %625 = vmatpush1.msra.mxu0 0.0
    %626 = vmatprep.subr.mxu0 0.0
    %627 = vmatpush1.msra.mxu0 0.0
    %628 = vmatprep.subr.mxu0 0.0
    %629 = vmatpush1.msra.mxu0 0.0
    %630 = vmatprep.subr.mxu0 0.0
    %631 = vmatpush1.msra.mxu0 0.0
    %632 = vmatprep.subr.mxu0 0.0
    %633 = vmatpush1.msra.mxu0 0.0
    %634 = vmatprep.subr.mxu0 0.0
    %635 = vmatpush1.msra.mxu0 0.0
    %636 = vmatprep.subr.mxu0 0.0
    %637 = vmatpush1.msra.mxu0 0.0
    %638 = vmatprep.subr.mxu0 0.0
    %639 = vmatpush1.msra.mxu0 0.0
    %640 = vmatprep.subr.mxu0 0.0
    %641 = vmatpush1.msra.mxu0 0.0
    %642 = vmatprep.subr.mxu0 0.0
    %643 = vmatpush1.msra.mxu0 0.0
    %644 = vmatprep.subr.mxu0 0.0
    %645 = vmatpush1.msra.mxu0 0.0
    %646 = vmatprep.subr.mxu0 0.0
    %647 = vmatpush1.msra.mxu0 0.0
    %648 = vmatprep.subr.mxu0 0.0
    %649 = vmatpush1.msra.mxu0 0.0
    %650 = vmatprep.subr.mxu0 0.0
    %651 = vmatpush1.msra.mxu0 0.0
    %652 = vmatprep.subr.mxu0 0.0
    %653 = vmatpush1.msra.mxu0 0.0
    %654 = vmatprep.subr.mxu0 0.0
    %655 = vmatpush1.msra.mxu0 0.0
    %656 = vmatprep.subr.mxu0 0.0
    %657 = vmatpush1.msra.mxu0 0.0
    %658 = vmatprep.subr.mxu0 0.0
    %659 = vmatpush1.msra.mxu0 0.0
    %660 = vmatprep.subr.mxu0 0.0
    %661 = vmatpush1.msra.mxu0 0.0
    %662 = vmatprep.subr.mxu0 0.0
    %663 = vmatpush1.msra.mxu0 0.0
    %664 = vmatprep.subr.mxu0 0.0
    %665 = vmatpush1.msra.mxu0 0.0
    %666 = vmatprep.subr.mxu0 0.0
    %667 = vmatpush1.msra.mxu0 0.0
    %668 = vmatprep.subr.mxu0 0.0
    %669 = vmatpush1.msra.mxu0 0.0
    %670 = vmatprep.subr.mxu0 0.0
    %671 = vmatpush1.msra.mxu0 0.0
    %672 = vmatprep.subr.mxu0 0.0
    %673 = vmatpush1.msra.mxu0 0.0
    %674 = vmatprep.subr.mxu0 0.0
    %675 = vmatpush1.msra.mxu0 0.0
    %676 = vmatprep.subr.mxu0 0.0
    %677 = vmatpush1.msra.mxu0 0.0
    %678 = vmatprep.subr.mxu0 0.0
    %679 = vmatpush1.msra.mxu0 0.0
    %680 = vmatprep.subr.mxu0 0.0
    %681 = vmatpush1.msra.mxu0 0.0
    %682 = vmatprep.subr.mxu0 0.0
    %683 = vmatpush1.msra.mxu0 0.0
    %684 = vmatprep.mubr.f32.mxu0 0.0
    %685 = vmatmul.mubr.f32.gmra.mrb[0].mxu0 %v618
    %v686 = vpop.f32.mrb[0].mxu0
    %v687 = vadd.f32 0.0, %v686
    %v688 = vpop.f32.mrb[0].mxu0
    %689 = vdwg.mxu0
    %v690 = vadd.f32 %v616, %v687
    %v691 = vtanh.pop %v690
    %692 = vst.msk [vmem:[#allocation2 + $0x7] sm:$0x1] %vm131, %v691
    %693 = vst.msk [vmem:[#allocation9] sm:$0x1] %vm131, %v691
    %v694 = vld [vmem:[#allocation2] sm:$0xff]
    %v695 = vstv %s46
    %v697 = vsel %vm51, %v44, 0
    %v700 = vsel %vm51, %v694, 0
    %702 = vmatprep.subr.mxu0 0.0
    %703 = vmatpush1.xpose.msra.mxu0 %v700
    %704 = vmatprep.subr.mxu0 0.0
    %705 = vmatpush1.xpose.msra.mxu0 0.0
    %706 = vmatprep.subr.mxu0 0.0
    %707 = vmatpush1.xpose.msra.mxu0 0.0
    %708 = vmatprep.subr.mxu0 0.0
    %709 = vmatpush1.xpose.msra.mxu0 0.0
    %710 = vmatprep.subr.mxu0 0.0
    %711 = vmatpush1.xpose.msra.mxu0 0.0
    %712 = vmatprep.subr.mxu0 0.0
    %713 = vmatpush1.xpose.msra.mxu0 0.0
    %714 = vmatprep.subr.mxu0 0.0
    %715 = vmatpush1.xpose.msra.mxu0 0.0
    %716 = vmatprep.subr.mxu0 0.0
    %717 = vmatpush1.xpose.msra.mxu0 0.0
    %718 = vmatprep.subr.mxu0 0.0
    %719 = vmatpush1.xpose.msra.mxu0 0.0
    %720 = vmatprep.subr.mxu0 0.0
    %721 = vmatpush1.xpose.msra.mxu0 0.0
    %722 = vmatprep.subr.mxu0 0.0
    %723 = vmatpush1.xpose.msra.mxu0 0.0
    %724 = vmatprep.subr.mxu0 0.0
    %725 = vmatpush1.xpose.msra.mxu0 0.0
    %726 = vmatprep.subr.mxu0 0.0
    %727 = vmatpush1.xpose.msra.mxu0 0.0
    %728 = vmatprep.subr.mxu0 0.0
    %729 = vmatpush1.xpose.msra.mxu0 0.0
    %730 = vmatprep.subr.mxu0 0.0
    %731 = vmatpush1.xpose.msra.mxu0 0.0
    %732 = vmatprep.subr.mxu0 0.0
    %733 = vmatpush1.xpose.msra.mxu0 0.0
    %734 = vmatprep.subr.mxu0 0.0
    %735 = vmatpush1.xpose.msra.mxu0 0.0
    %736 = vmatprep.subr.mxu0 0.0
    %737 = vmatpush1.xpose.msra.mxu0 0.0
    %738 = vmatprep.subr.mxu0 0.0
    %739 = vmatpush1.xpose.msra.mxu0 0.0
    %740 = vmatprep.subr.mxu0 0.0
    %741 = vmatpush1.xpose.msra.mxu0 0.0
    %742 = vmatprep.subr.mxu0 0.0
    %743 = vmatpush1.xpose.msra.mxu0 0.0
    %744 = vmatprep.subr.mxu0 0.0
    %745 = vmatpush1.xpose.msra.mxu0 0.0
    %746 = vmatprep.subr.mxu0 0.0
    %747 = vmatpush1.xpose.msra.mxu0 0.0
    %748 = vmatprep.subr.mxu0 0.0
    %749 = vmatpush1.xpose.msra.mxu0 0.0
    %750 = vmatprep.subr.mxu0 0.0
    %751 = vmatpush1.xpose.msra.mxu0 0.0
    %752 = vmatprep.subr.mxu0 0.0
    %753 = vmatpush1.xpose.msra.mxu0 0.0
    %754 = vmatprep.subr.mxu0 0.0
    %755 = vmatpush1.xpose.msra.mxu0 0.0
    %756 = vmatprep.subr.mxu0 0.0
    %757 = vmatpush1.xpose.msra.mxu0 0.0
    %758 = vmatprep.subr.mxu0 0.0
    %759 = vmatpush1.xpose.msra.mxu0 0.0
    %760 = vmatprep.subr.mxu0 0.0
    %761 = vmatpush1.xpose.msra.mxu0 0.0
    %762 = vmatprep.subr.mxu0 0.0
    %763 = vmatpush1.xpose.msra.mxu0 0.0
    %764 = vmatprep.subr.mxu0 0.0
    %765 = vmatpush1.xpose.msra.mxu0 0.0
    %766 = vmatprep.mubr.f32.mxu0 0.0
    %767 = vmatmul.mubr.f32.gmra.mrb[0].mxu0 %v697
    %v768 = vpop.f32.mrb[0].mxu0
    %v769 = vadd.f32 %v695, %v768
    %v770 = vpop.f32.mrb[0].mxu0
    %771 = vdwg.mxu0
    %vm772 = vcmask 57344
    %773 = vst.msk [vmem:[#allocation8] sm:$0x1] %vm772, %v769
    // Predicated region
    $region18: #{tpu_custom_call.1} parent=1 // pred_check
      _
    $region19: #{tpu_custom_call.1} parent=1 // pred_check_branch
      %775 = sbr.rel (0) target = $region21
    $region20: #{tpu_custom_call.1} parent=1 // pred_region
      %s777 = ssub.s32 16, 16
      %778 = vsyncadd [#allocation5], %s777
      %s780 = sshll.u32 [#allocation8], 4
      %s781 = int_to_ptr.vmem [resolvable:$true] %s780
      %783 = dma.vmem_to_hbm [thread:$0]  %s781, 16, %s2, [#allocation5]
    $region21: #{tpu_custom_call.1} parent=1 // pred_fallthru
      _
    // Predicated region
    $region22: #{tpu_custom_call.1} parent=1 // pred_check
      _
    $region23: #{tpu_custom_call.1} parent=1 // pred_check_branch
      %785 = sbr.rel (0) target = $region25
    $region24: #{tpu_custom_call.1} parent=1 // pred_region
      %s787 = ssub.s32 16, 16
      %788 = vsyncadd [#allocation10], %s787
      %s790 = sshll.u32 [#allocation9], 4
      %s791 = int_to_ptr.vmem [resolvable:$true] %s790
      %793 = dma.vmem_to_hbm [thread:$0]  %s791, 16, %s3, [#allocation10]
    $region25: #{tpu_custom_call.1} parent=1 // pred_fallthru
      _
    // Predicated region
    $region26: #{tpu_custom_call.1} parent=1 // pred_check
      _
    $region27: #{tpu_custom_call.1} parent=1 // pred_check_branch
      %795 = sbr.rel (0) target = $region29
    $region28: #{tpu_custom_call.1} parent=1 // pred_region
      %796 = dma.done [#allocation5], 16
    $region29: #{tpu_custom_call.1} parent=1 // pred_fallthru
      _
    // Predicated region
    $region30: #{tpu_custom_call.1} parent=1 // pred_check
      _
    $region31: #{tpu_custom_call.1} parent=1 // pred_check_branch
      %798 = sbr.rel (0) target = $region33
    $region32: #{tpu_custom_call.1} parent=1 // pred_region
      %799 = dma.done [#allocation10], 16
    $region33: #{tpu_custom_call.1} parent=1 // pred_fallthru
      _
    %800 = vsyncpa [#allocation4], 1
    %801 = vsyncpa [#allocation5], 1
    %802 = vsyncpa [#allocation10], 1
    %803 = vsyncpa [#allocation6], 1

</llo_original>
